<compile_context>
chip_gen: v7x
topology: tpu7x:2x2x1
jax: 0.10.0
libtpu: 0.0.40
codegen_flags: <defaults>
</compile_context>

<pallas_src>
import jax
import jax.numpy as jnp
from jax.experimental import pallas as pl
from jax.experimental.pallas import tpu as pltpu


def _round_up(n: int, m: int) -> int:
    return ((n + m - 1) // m) * m


def _make_kernel(eps: float):
    def kernel(x_ref, g_ref, b_ref, w_ref, o_ref, y_ref):
        # x_ref: (tm, H)     g_ref/b_ref: (1, H)     w_ref: (H, tn) bf16
        # o_ref: (tm, tn)    y_ref: (tm, H) bf16 VMEM scratch (cached LN(x))
        @pl.when(pl.program_id(1) == 0)
        def _():
            x = x_ref[...].astype(jnp.float32)
            mean = jnp.mean(x, axis=-1, keepdims=True)
            var = jnp.mean(jnp.square(x - mean), axis=-1, keepdims=True)
            xn = (x - mean) * jax.lax.rsqrt(var + eps)
            y = xn * g_ref[...].astype(jnp.float32) + b_ref[...].astype(jnp.float32)
            y_ref[...] = y.astype(y_ref.dtype)

        # bf16 x bf16 -> f32 accumulation on the MXU.
        o_ref[...] = jnp.dot(
            y_ref[...], w_ref[...], preferred_element_type=jnp.float32
        ).astype(o_ref.dtype)

    return kernel


def gpt_lm_head(x, gamma, beta, w_t, *, eps=1e-5, tm=None, tn=None,
                out_dtype=jnp.float32):
    """logits = LayerNorm(x; gamma, beta, eps) @ w_t.

    x:     [B, S, H]
    gamma: [H]      (ln_f.weight)
    beta:  [H]      (ln_f.bias)
    w_t:   [H, V]   (lm_head.weight transposed; nn.Linear stores [V, H])
    Returns logits [B, S, V] in out_dtype.
    """
    B, S, H = x.shape
    V = w_t.shape[1]
    M = B * S

    # --- tile selection (8 / 128 aligned; never tm = M by default) ----------
    if tm is None:
        tm = 512 if M >= 512 else _round_up(M, 8)
    if tn is None:
        tn = 512 if V >= 512 else _round_up(V, 128)

    Mp = _round_up(M, tm)
    Vp = _round_up(V, tn)

    # --- operand prep: pad rows / vocab, weight to bf16 ---------------------
    x2 = x.reshape(M, H)
    if Mp != M:
        x2 = jnp.pad(x2, ((0, Mp - M), (0, 0)))
    g2 = gamma.reshape(1, H)
    b2 = beta.reshape(1, H)
    w_bf = w_t.astype(jnp.bfloat16)
    if Vp != V:
        w_bf = jnp.pad(w_bf, ((0, 0), (0, Vp - V)))

    grid = (Mp // tm, Vp // tn)
    kernel = _make_kernel(float(eps))

    # --- VMEM budget / scheduler hints --------------------------------------
    xb = jnp.dtype(x2.dtype).itemsize
    ob = jnp.dtype(out_dtype).itemsize
    vmem_est = (2 * tm * H * xb      # double-buffered x tile
                + tm * H * 2         # bf16 LN scratch
                + 2 * H * tn * 2     # double-buffered bf16 weight tile
                + 2 * tm * tn * ob   # double-buffered output tile
                + 4 * H * 4)         # gamma / beta
    compiler_kwargs = dict(dimension_semantics=("parallel", "arbitrary"))
    if vmem_est > 30 * 1024 * 1024:
        compiler_kwargs["vmem_limit_bytes"] = int(vmem_est * 1.25)

    cost = pl.CostEstimate(
        flops=2 * Mp * H * Vp + 8 * Mp * H,
        transcendentals=Mp,
        bytes_accessed=Mp * H * xb + grid[0] * H * Vp * 2 + Mp * Vp * ob,
    )

    out = pl.pallas_call(
        kernel,
        out_shape=jax.ShapeDtypeStruct((Mp, Vp), out_dtype),
        grid_spec=pltpu.PrefetchScalarGridSpec(
            num_scalar_prefetch=0,
            grid=grid,
            in_specs=[
                pl.BlockSpec((tm, H), lambda i, j: (i, 0)),   # x rows (constant over j)
                pl.BlockSpec((1, H), lambda i, j: (0, 0)),    # gamma
                pl.BlockSpec((1, H), lambda i, j: (0, 0)),    # beta
                pl.BlockSpec((H, tn), lambda i, j: (0, j)),   # W^T tile (bf16, streamed)
            ],
            out_specs=pl.BlockSpec((tm, tn), lambda i, j: (i, j)),
            scratch_shapes=[pltpu.VMEM((tm, H), jnp.bfloat16)],  # cached LN(x)
        ),
        compiler_params=pltpu.CompilerParams(**compiler_kwargs),
        cost_estimate=cost,
    )(x2, g2, b2, w_bf)

    return out[:M, :V].reshape(B, S, V)


def reference_f32(x, gamma, beta, w_t, eps=1e-5):
    xf = x.astype(jnp.float32)
    mean = jnp.mean(xf, axis=-1, keepdims=True)
    var = jnp.mean(jnp.square(xf - mean), axis=-1, keepdims=True)
    xn = (xf - mean) * jax.lax.rsqrt(var + eps)
    y = xn * gamma + beta
    return y @ w_t


def reference_bf16(x, gamma, beta, w_t, eps=1e-5):
    # Same quantization the kernel applies: f32 LN stats, bf16 matmul operands,
    # f32 accumulation.
    xf = x.astype(jnp.float32)
    mean = jnp.mean(xf, axis=-1, keepdims=True)
    var = jnp.mean(jnp.square(xf - mean), axis=-1, keepdims=True)
    xn = (xf - mean) * jax.lax.rsqrt(var + eps)
    y = (xn * gamma + beta).astype(jnp.bfloat16)
    return jnp.dot(y, w_t.astype(jnp.bfloat16), preferred_element_type=jnp.float32)


if __name__ == "__main__":
    # Small GPT2-like config: n_embd=32, vocab_size=256, layer_norm_epsilon=1e-5
    B, S, H, V = 2, 8, 32, 256
    eps = 1e-5

    key = jax.random.PRNGKey(0)
    kx, kg, kb, kw = jax.random.split(key, 4)

    x = jax.random.normal(kx, (B, S, H), dtype=jnp.float32)
    gamma = jnp.ones((H,), jnp.float32) + 0.01 * jax.random.normal(kg, (H,), jnp.float32)
    beta = 0.01 * jax.random.normal(kb, (H,), jnp.float32)
    # nn.Linear weight is [V, H]; pass it transposed [H, V] to the kernel.
    w = 0.02 * jax.random.normal(kw, (V, H), jnp.float32)
    w_t = w.T

    out = gpt_lm_head(x, gamma, beta, w_t, eps=eps)
    out = jax.block_until_ready(out)

    assert out.shape == (B, S, V), out.shape
    ref_q = reference_bf16(x, gamma, beta, w_t, eps=eps)
    ref_f = reference_f32(x, gamma, beta, w_t, eps=eps)
    assert jnp.allclose(out, ref_q, atol=5e-3, rtol=5e-3), "mismatch vs bf16-quantized reference"
    assert jnp.allclose(out, ref_f, atol=2e-2, rtol=2e-2), "mismatch vs f32 reference"

    print("KERNEL_OK")
</pallas_src>

<mosaic_0001>
module attributes {stable_mosaic.version = 11 : i64} {
  func.func @kernel(%arg0: i32, %arg1: i32, %arg2: memref<16x32xf32, #tpu.memory_space<vmem>>, %arg3: memref<1x32xf32, #tpu.memory_space<vmem>>, %arg4: memref<1x32xf32, #tpu.memory_space<vmem>>, %arg5: memref<32x256xbf16, #tpu.memory_space<vmem>>, %arg6: memref<16x256xf32, #tpu.memory_space<vmem>>, %arg7: memref<16x32xbf16, #tpu.memory_space<vmem>>) attributes {dimension_semantics = [#tpu.dimension_semantics<parallel>, #tpu.dimension_semantics<arbitrary>], iteration_bounds = array<i64: 1, 1>, scalar_prefetch = 0 : i64, scratch_operands = 1 : i64, tpu.core_type = #tpu.core_type<tc>, window_params = [{transform_indices = @transform_0, window_bounds = array<i64: 16, 32>}, {pipeline_mode = #tpu.pipeline_mode<synchronous>, transform_indices = @transform_1, window_bounds = array<i64: 1, 32>}, {pipeline_mode = #tpu.pipeline_mode<synchronous>, transform_indices = @transform_2, window_bounds = array<i64: 1, 32>}, {transform_indices = @transform_3, window_bounds = array<i64: 32, 256>}, {transform_indices = @transform_4, window_bounds = array<i64: 16, 256>}]} {
    %c0_i32 = arith.constant 0 : i32
    %0 = arith.cmpi eq, %arg1, %c0_i32 : i32
    %1 = arith.extui %0 : i1 to i32
    %c0_i32_0 = arith.constant 0 : i32
    %2 = arith.cmpi ne, %1, %c0_i32_0 : i32
    scf.if %2 {
      %c0_6 = arith.constant 0 : index
      %c0_7 = arith.constant 0 : index
      %7 = vector.load %arg2[%c0_6, %c0_7] : memref<16x32xf32, #tpu.memory_space<vmem>>, vector<16x32xf32>
      %cst_8 = arith.constant dense<0.000000e+00> : vector<16xf32>
      %8 = vector.multi_reduction <add>, %7, %cst_8 [1] : vector<16x32xf32> to vector<16xf32>
      %9 = vector.shape_cast %8 : vector<16xf32> to vector<16x1xf32>
      %cst_9 = arith.constant 3.200000e+01 : f32
      %10 = vector.broadcast %cst_9 : f32 to vector<16x1xf32>
      %11 = arith.divf %9, %10 : vector<16x1xf32>
      %12 = vector.broadcast %11 : vector<16x1xf32> to vector<16x32xf32>
      %13 = arith.subf %7, %12 : vector<16x32xf32>
      %14 = arith.mulf %13, %13 : vector<16x32xf32>
      %cst_10 = arith.constant dense<0.000000e+00> : vector<16xf32>
      %15 = vector.multi_reduction <add>, %14, %cst_10 [1] : vector<16x32xf32> to vector<16xf32>
      %16 = vector.shape_cast %15 : vector<16xf32> to vector<16x1xf32>
      %cst_11 = arith.constant 3.200000e+01 : f32
      %17 = vector.broadcast %cst_11 : f32 to vector<16x1xf32>
      %18 = arith.divf %16, %17 : vector<16x1xf32>
      %19 = vector.broadcast %11 : vector<16x1xf32> to vector<16x32xf32>
      %20 = arith.subf %7, %19 : vector<16x32xf32>
      %cst_12 = arith.constant 9.99999974E-6 : f32
      %21 = vector.broadcast %cst_12 : f32 to vector<16x1xf32>
      %22 = arith.addf %18, %21 : vector<16x1xf32>
      %23 = math.rsqrt %22 : vector<16x1xf32>
      %24 = vector.broadcast %23 : vector<16x1xf32> to vector<16x32xf32>
      %25 = arith.mulf %20, %24 : vector<16x32xf32>
      %c0_13 = arith.constant 0 : index
      %c0_14 = arith.constant 0 : index
      %26 = vector.load %arg3[%c0_13, %c0_14] : memref<1x32xf32, #tpu.memory_space<vmem>>, vector<1x32xf32>
      %27 = vector.broadcast %26 : vector<1x32xf32> to vector<16x32xf32>
      %28 = arith.mulf %25, %27 : vector<16x32xf32>
      %c0_15 = arith.constant 0 : index
      %c0_16 = arith.constant 0 : index
      %29 = vector.load %arg4[%c0_15, %c0_16] : memref<1x32xf32, #tpu.memory_space<vmem>>, vector<1x32xf32>
      %30 = vector.broadcast %29 : vector<1x32xf32> to vector<16x32xf32>
      %31 = arith.addf %28, %30 : vector<16x32xf32>
      %32 = arith.truncf %31 : vector<16x32xf32> to vector<16x32xbf16>
      %c0_17 = arith.constant 0 : index
      %c0_18 = arith.constant 0 : index
      %33 = vector.load %arg7[%c0_17, %c0_18] : memref<16x32xbf16, #tpu.memory_space<vmem>>, vector<16x32xbf16>
      tpu.vector_store %arg7[%c0_17, %c0_18], %32 {strides = array<i32>} : memref<16x32xbf16, #tpu.memory_space<vmem>>, vector<16x32xbf16>,
    } else {
    }
    %c0 = arith.constant 0 : index
    %c0_1 = arith.constant 0 : index
    %3 = vector.load %arg7[%c0, %c0_1] : memref<16x32xbf16, #tpu.memory_space<vmem>>, vector<16x32xbf16>
    %c0_2 = arith.constant 0 : index
    %c0_3 = arith.constant 0 : index
    %4 = vector.load %arg5[%c0_2, %c0_3] : memref<32x256xbf16, #tpu.memory_space<vmem>>, vector<32x256xbf16>
    %cst = arith.constant dense<0.000000e+00> : vector<16x256xf32>
    %5 = tpu.matmul %3, %4, %cst {dimension_numbers = #tpu.dot_dimension_numbers<[1], [0], [0], [1], [0, 0, 1, 1], [], []>} : vector<16x32xbf16>, vector<32x256xbf16>, vector<16x256xf32> -> vector<16x256xf32>
    %c0_4 = arith.constant 0 : index
    %c0_5 = arith.constant 0 : index
    %6 = vector.load %arg6[%c0_4, %c0_5] : memref<16x256xf32, #tpu.memory_space<vmem>>, vector<16x256xf32>
    tpu.vector_store %arg6[%c0_4, %c0_5], %5 {strides = array<i32>} : memref<16x256xf32, #tpu.memory_space<vmem>>, vector<16x256xf32>,
    return
  }
  func.func @transform_0(%arg0: i32, %arg1: i32) -> (i32, i32) {
    %c0_i32 = arith.constant 0 : i32
    %c0_i32_0 = arith.constant 0 : i32
    return %arg0, %c0_i32 : i32, i32
  }
  func.func @transform_1(%arg0: i32, %arg1: i32) -> (i32, i32) {
    %c0_i32 = arith.constant 0 : i32
    %c0_i32_0 = arith.constant 0 : i32
    %c0_i32_1 = arith.constant 0 : i32
    return %c0_i32, %c0_i32_0 : i32, i32
  }
  func.func @transform_2(%arg0: i32, %arg1: i32) -> (i32, i32) {
    %c0_i32 = arith.constant 0 : i32
    %c0_i32_0 = arith.constant 0 : i32
    %c0_i32_1 = arith.constant 0 : i32
    return %c0_i32, %c0_i32_0 : i32, i32
  }
  func.func @transform_3(%arg0: i32, %arg1: i32) -> (i32, i32) {
    %c0_i32 = arith.constant 0 : i32
    %c0_i32_0 = arith.constant 0 : i32
    return %c0_i32, %arg1 : i32, i32
  }
  func.func @transform_4(%arg0: i32, %arg1: i32) -> (i32, i32) {
    %c0_i32 = arith.constant 0 : i32
    return %arg0, %arg1 : i32, i32
  }
}

</mosaic_0001>

<llo_original>
// kernel: tpu_custom_call.1
$region0: #{tpu_custom_call.1}
  #allocation0 [shape = 'u32[]', space=smem, size = 0x4, offset = 0x4, fixed_abs, tag = 'smem constant byte address 0x4 - core index']
  #allocation1 [shape = 'u32[144,128]{1,0:T(1,128)}', space=vmem, size = 0x12000, scoped, tag = 'internal scratch']
  #allocation2 [shape = 'bf16[16,32]{1,0:T(16,128)(2,1)}', space=vmem, size = 0x1000, scoped, tag = 'scratch operand']
  %s0 = inlined_call_operand.hbm [shape: f32[16,32], index: 0, kind: input, shape index: {}]
  %s1 = inlined_call_operand.vmem [shape: f32[1,32], index: 1, kind: input, shape index: {}]
  %s2 = inlined_call_operand.vmem [shape: f32[1,32], index: 2, kind: input, shape index: {}]
  %s3 = inlined_call_operand.hbm [shape: bf16[32,256], index: 3, kind: input, shape index: {}]
  %s4 = inlined_call_operand.hbm [shape: f32[16,256], index: 4, kind: output, shape index: {}]
  %s5 = sld [smem:[#allocation0]]
  $region38: #{tpu_custom_call.1} parent=0
    _
  %s7 = ssub.s32 1, %s5
  %s8 = scalar_select 0, %s7, %s5
  $region1: #{tpu_custom_call.1} parent=0
    #allocation3 [shape = 'u8[8192]{0}', space=vmem, size = 0x2000, scoped, tag = 'input window, operand 0, single buffered']
    #allocation4 [shape = 's32[1]{0}', space=sflag, size = 0x4, scoped, tag = 'scoped memory for tpu_custom_call.1']
    #allocation5 [shape = 's32[1]{0}', space=sflag, size = 0x4, scoped, tag = 'scoped memory for tpu_custom_call.1']
    #allocation6 [shape = 'u8[16384]{0}', space=vmem, size = 0x4000, scoped, tag = 'input window, operand 3, single buffered']
    #allocation7 [shape = 's32[1]{0}', space=sflag, size = 0x4, scoped, tag = 'scoped memory for tpu_custom_call.1']
    #allocation8 [shape = 'u8[16384]{0}', space=vmem, size = 0x4000, scoped, tag = 'output window, operand 0, single buffered']
    %9 = vsyncpa [#allocation4], 0
    %10 = vsyncpa [#allocation7], 0
    %11 = vsyncpa [#allocation5], 0
    // Predicated region
    $region2: #{tpu_custom_call.1} parent=1 // pred_check
      _
    $region3: #{tpu_custom_call.1} parent=1 // pred_check_branch
      %13 = sbr.rel (0) target = $region5
    $region4: #{tpu_custom_call.1} parent=1 // pred_region
      %s15 = ssub.s32 256, 256
      %16 = vsyncadd [#allocation4], %s15
      %s17 = sshll.u32 [#allocation3], 4
      %s18 = int_to_ptr.vmem [resolvable:$true] %s17
      %23 = dma.hbm_to_vmem [thread:$0]  %s0, 256, %s18, [#allocation4], 128, 128, 8
    $region5: #{tpu_custom_call.1} parent=1 // pred_fallthru
      _
    // Predicated region
    $region6: #{tpu_custom_call.1} parent=1 // pred_check
      _
    $region7: #{tpu_custom_call.1} parent=1 // pred_check_branch
      %25 = sbr.rel (0) target = $region9
    $region8: #{tpu_custom_call.1} parent=1 // pred_region
      _
    $region9: #{tpu_custom_call.1} parent=1 // pred_fallthru
      _
    // Predicated region
    $region10: #{tpu_custom_call.1} parent=1 // pred_check
      _
    $region11: #{tpu_custom_call.1} parent=1 // pred_check_branch
      %27 = sbr.rel (0) target = $region13
    $region12: #{tpu_custom_call.1} parent=1 // pred_region
      _
    $region13: #{tpu_custom_call.1} parent=1 // pred_fallthru
      _
    // Predicated region
    $region14: #{tpu_custom_call.1} parent=1 // pred_check
      _
    $region15: #{tpu_custom_call.1} parent=1 // pred_check_branch
      %29 = sbr.rel (0) target = $region17
    $region16: #{tpu_custom_call.1} parent=1 // pred_region
      %s31 = ssub.s32 512, 512
      %32 = vsyncadd [#allocation7], %s31
      %s33 = sshll.u32 [#allocation6], 4
      %s34 = int_to_ptr.vmem [resolvable:$true] %s33
      %39 = dma.hbm_to_vmem [thread:$0]  %s3, 512, %s34, [#allocation7], 128, 128, 8
    $region17: #{tpu_custom_call.1} parent=1 // pred_fallthru
      _
    // Predicated region
    $region18: #{tpu_custom_call.1} parent=1 // pred_check
      _
    $region19: #{tpu_custom_call.1} parent=1 // pred_check_branch
      %41 = sbr.rel (0) target = $region21
    $region20: #{tpu_custom_call.1} parent=1 // pred_region
      %42 = dma.done [#allocation4], 256
    $region21: #{tpu_custom_call.1} parent=1 // pred_fallthru
      _
    // Predicated region
    $region22: #{tpu_custom_call.1} parent=1 // pred_check
      _
    $region23: #{tpu_custom_call.1} parent=1 // pred_check_branch
      %44 = sbr.rel (0) target = $region25
    $region24: #{tpu_custom_call.1} parent=1 // pred_region
      %45 = dma.done [#allocation7], 512
    $region25: #{tpu_custom_call.1} parent=1 // pred_fallthru
      _
    %p47 = scmp.eq.s32.totalorder 0, 0
    // Predicated region
    $region26: #{tpu_custom_call.1} parent=1 // pred_check
      %p48 = pneg %p47
    $region27: #{tpu_custom_call.1} parent=1 // pred_check_branch
      %50 = sbr.rel (%p48) target = $region29
    $region28: #{tpu_custom_call.1} parent=1 // pred_region
      %v51 = vld [vmem:[#allocation3] sm:$0xff]
      %v52 = vld [vmem:[#allocation3 + $0x8] sm:$0xff]
      %vm53 = vcmask 261120
      %v54 = vsel %vm53, %v51, 0.0
      %55 = vadd.xlane.f32.xlu0 %v54
      %v56 = vpop.xlane.xlu0 %55
      %v57 = vsel %vm53, %v52, 0.0
      %58 = vadd.xlane.f32.xlu0 %v57
      %v59 = vpop.xlane.xlu0 %58
      %v60 = vrcp.pop 32.0
      %v61 = vmul.f32 %v56, %v60
      %v62 = vmul.f32 %v59, %v60
      %v63 = vsub.f32 %v51, %v61
      %v64 = vsub.f32 %v52, %v62
      %v65 = vmul.f32 %v63, %v63
      %v66 = vmul.f32 %v64, %v64
      %v67 = vsel %vm53, %v65, 0.0
      %68 = vadd.xlane.f32.xlu0 %v67
      %v69 = vpop.xlane.xlu0 %68
      %v70 = vsel %vm53, %v66, 0.0
      %71 = vadd.xlane.f32.xlu0 %v70
      %v72 = vpop.xlane.xlu0 %71
      %v73 = vmul.f32 %v69, %v60
      %v74 = vmul.f32 %v72, %v60
      %v75 = vadd.f32 %v73, 1e-05
      %v76 = vadd.f32 %v74, 1e-05
      %v77 = vrsqrt.pop %v75
      %v78 = vrsqrt.pop %v76
      %v79 = vmul.f32 %v63, %v77
      %v80 = vmul.f32 %v64, %v78
      %v81 = vld [vmem:[%s1] sm:$0x1]
      %v83 = vlaneseq
      %v84 = vshrl.u32 %v83, 7
      %v85 = vsub.s32 0, %v84
      %v86 = vrot.slane %v81, %v85
      %v88 = vmul.f32 %v79, %v86
      %v89 = vmul.f32 %v80, %v86
      %v90 = vld [vmem:[%s2] sm:$0x1]
      %v92 = vlaneseq
      %v93 = vshrl.u32 %v92, 7
      %v94 = vsub.s32 0, %v93
      %v95 = vrot.slane %v90, %v94
      %v97 = vadd.f32 %v88, %v95
      %v98 = vadd.f32 %v89, %v95
      %v99 = vpack.c.bf16 %v98, %v97
      %100 = vst.msk [vmem:[#allocation2] sm:$0xff] %vm53, %v99
    $region29: #{tpu_custom_call.1} parent=1 // pred_fallthru
      _
    %v101 = vld [vmem:[#allocation2] sm:$0xff]
    %v102 = vld [vmem:[#allocation6] sm:$0xff]
    %v103 = vld [vmem:[#allocation6 + $0x8] sm:$0xff]
    %v104 = vld [vmem:[#allocation6 + $0x10] sm:$0xff]
    %v105 = vld [vmem:[#allocation6 + $0x18] sm:$0xff]
    %v110 = vunpack.c.l.b16 %v102
    %v111 = vunpack.c.h.b16 %v102
    %v112 = vunpack.c.l.b16 %v103
    %v113 = vunpack.c.h.b16 %v103
    %v114 = vunpack.c.l.b16 %v104
    %v115 = vunpack.c.h.b16 %v104
    %v116 = vunpack.c.l.b16 %v105
    %v117 = vunpack.c.h.b16 %v105
    %v118 = vpack.c.b16 %v112, %v110
    %v119 = vpack.c.b16 %v113, %v111
    %v120 = vpack.c.b16 %v116, %v114
    %v121 = vpack.c.b16 %v117, %v115
    %vm126 = vcmask 261120
    %v128 = vsel %vm126, %v101, 0
    %130 = vmatprep.subr.bf16.mxu0 %v119
    %131 = vmatpush1.bf16.msra.mxu0 %v118
    %132 = vmatprep.subr.bf16.mxu0 %v121
    %133 = vmatpush1.bf16.msra.mxu0 %v120
    %134 = vmatprep.subr.bf16.mxu0 0
    %135 = vmatpush1.bf16.msra.mxu0 0
    %136 = vmatprep.subr.bf16.mxu0 0
    %137 = vmatpush1.bf16.msra.mxu0 0
    %138 = vmatprep.subr.bf16.mxu0 0
    %139 = vmatpush1.bf16.msra.mxu0 0
    %140 = vmatprep.subr.bf16.mxu0 0
    %141 = vmatpush1.bf16.msra.mxu0 0
    %142 = vmatprep.subr.bf16.mxu0 0
    %143 = vmatpush1.bf16.msra.mxu0 0
    %144 = vmatprep.subr.bf16.mxu0 0
    %145 = vmatpush1.bf16.msra.mxu0 0
    %146 = vmatprep.subr.bf16.mxu0 0
    %147 = vmatpush1.bf16.msra.mxu0 0
    %148 = vmatprep.subr.bf16.mxu0 0
    %149 = vmatpush1.bf16.msra.mxu0 0
    %150 = vmatprep.subr.bf16.mxu0 0
    %151 = vmatpush1.bf16.msra.mxu0 0
    %152 = vmatprep.subr.bf16.mxu0 0
    %153 = vmatpush1.bf16.msra.mxu0 0
    %154 = vmatprep.subr.bf16.mxu0 0
    %155 = vmatpush1.bf16.msra.mxu0 0
    %156 = vmatprep.subr.bf16.mxu0 0
    %157 = vmatpush1.bf16.msra.mxu0 0
    %158 = vmatprep.subr.bf16.mxu0 0
    %159 = vmatpush1.bf16.msra.mxu0 0
    %160 = vmatprep.subr.bf16.mxu0 0
    %161 = vmatpush1.bf16.msra.mxu0 0
    %162 = vmatprep.mubr.bf16.mxu0 0
    %163 = vmatmul.mubr.bf16.gmra.mrb[0].mxu0 %v128
    %v164 = vpop.f32.mrb[0].mxu0
    %v165 = vadd.f32 0.0, %v164
    %v166 = vpop.f32.mrb[0].mxu0
    %v167 = vadd.f32 0.0, %v166
    %v168 = vpop.f32.mrb[0].mxu0
    %v169 = vadd.f32 0.0, %v168
    %v170 = vpop.f32.mrb[0].mxu0
    %v171 = vadd.f32 0.0, %v170
    %172 = vdwg.mxu0
    %173 = vst [vmem:[#allocation8] sm:$0xff] %v165
    %174 = vst [vmem:[#allocation8 + $0x8] sm:$0xff] %v167
    %175 = vst [vmem:[#allocation8 + $0x10] sm:$0xff] %v169
    %176 = vst [vmem:[#allocation8 + $0x18] sm:$0xff] %v171
    // Predicated region
    $region30: #{tpu_custom_call.1} parent=1 // pred_check
      _
    $region31: #{tpu_custom_call.1} parent=1 // pred_check_branch
      %178 = sbr.rel (0) target = $region33
    $region32: #{tpu_custom_call.1} parent=1 // pred_region
      %s180 = ssub.s32 512, 512
      %181 = vsyncadd [#allocation5], %s180
      %s182 = sshll.u32 [#allocation8], 4
      %s183 = int_to_ptr.vmem [resolvable:$true] %s182
      %188 = dma.vmem_to_hbm [thread:$0]  %s183, 512, %s4, [#allocation5], 256, 256, 16
    $region33: #{tpu_custom_call.1} parent=1 // pred_fallthru
      _
    // Predicated region
    $region34: #{tpu_custom_call.1} parent=1 // pred_check
      _
    $region35: #{tpu_custom_call.1} parent=1 // pred_check_branch
      %190 = sbr.rel (0) target = $region37
    $region36: #{tpu_custom_call.1} parent=1 // pred_region
      %191 = dma.done [#allocation5], 512
    $region37: #{tpu_custom_call.1} parent=1 // pred_fallthru
      _
    %192 = vsyncpa [#allocation4], 1
    %193 = vsyncpa [#allocation7], 1
    %194 = vsyncpa [#allocation5], 1

</llo_original>
